<compile_context>
chip_gen: v7x
topology: tpu7x:2x2x1
jax: 0.10.0
libtpu: 0.0.40
codegen_flags: <defaults>
</compile_context>

<pallas_src>
import jax
import jax.numpy as jnp
from jax.experimental import pallas as pl
from jax.experimental.pallas import tpu as pltpu


_LANE = 128          # hidden feature dims padded to a multiple of the lane width
_BATCH_ROUND = 16    # batch-tile rounding (bf16 sublane packing for in-kernel casts)


def _round_up(x: int, m: int) -> int:
    return (x + m - 1) // m * m


# ----------------------------- kernel body ---------------------------------

def _critic_mlp_kernel(x_ref, w1_ref, w2_ref, w3_ref, b3_ref, o_ref):
    # x arrives f32 / unpadded lanes; cast to bf16 in-register for the MXU.
    x = x_ref[...].astype(w1_ref.dtype)
    # hidden layer 1: Linear(bias=False) + ReLU   (bf16 x bf16 -> f32 accumulate)
    h = jnp.dot(x, w1_ref[...], preferred_element_type=jnp.float32)
    h = jnp.maximum(h, 0.0).astype(w2_ref.dtype)
    # hidden layer 2: Linear(bias=False) + ReLU
    h = jnp.dot(h, w2_ref[...], preferred_element_type=jnp.float32)
    h = jnp.maximum(h, 0.0).astype(w3_ref.dtype)
    # Dropout(p=0.0) is the identity -> nothing to do.
    # output layer: Linear with bias (f32 bias add fused with the final store)
    out = jnp.dot(h, w3_ref[...], preferred_element_type=jnp.float32)
    o_ref[...] = (out + b3_ref[...]).astype(o_ref.dtype)


# ----------------------------- parameter prep ------------------------------

def prepare_critic_params(w1, w2, w3, b3, *, compute_dtype=jnp.bfloat16):
    """Pad/cast the constant weights ONCE (hoisted out of the per-call path).

    w1: [in, h1]   hidden-1 weight (pre-transposed), no bias
    w2: [h1, h2]   hidden-2 weight, no bias
    w3: [h2, out]  output weight
    b3: [1, out]   output bias

    Only the *hidden* dims are lane-padded (zero columns/rows contribute
    exactly 0 through the dots and ReLU(0)=0).  The input feature dim and the
    output dim stay unpadded so x reads and output writes move real bytes only.
    """
    in_dim, h1 = w1.shape
    h2, out_dim = w3.shape
    h1_p = _round_up(h1, _LANE)
    h2_p = _round_up(h2, _LANE)

    w1_p = jnp.pad(w1, ((0, 0), (0, h1_p - h1))).astype(compute_dtype)          # [in,   h1_p]
    w2_p = jnp.pad(w2, ((0, h1_p - h1), (0, h2_p - h2))).astype(compute_dtype)  # [h1_p, h2_p]
    w3_p = jnp.pad(w3, ((0, h2_p - h2), (0, 0))).astype(compute_dtype)          # [h2_p, out]
    b3_p = b3.astype(jnp.float32)                                               # [1,    out]
    return (w1_p, w2_p, w3_p, b3_p)


# ----------------------------- pallas forward ------------------------------

def critic_network_forward_pallas(x, params, *, block_m=2048):
    """CriticNetwork forward via Pallas (for large batches).

    x: [B, in] f32 activations; params from prepare_critic_params().
    """
    w1_p, w2_p, w3_p, b3_p = params
    B, in_dim = x.shape
    assert w1_p.shape[0] == in_dim
    h1_p = w1_p.shape[1]
    h2_p, out_dim = w3_p.shape

    # Batch tile: as large as possible while minimizing batch-pad waste,
    # rounded to 16 sublanes (packed bf16 vregs for the in-kernel casts).
    n_tiles = max(1, pl.cdiv(B, block_m))
    tm = _round_up(pl.cdiv(B, n_tiles), _BATCH_ROUND)
    b_pad = _round_up(B, tm)
    if b_pad != B:
        x = jnp.pad(x, ((0, b_pad - B), (0, 0)))  # padded rows sliced off below
    grid = (b_pad // tm,)

    w_dt_sz = jnp.dtype(w1_p.dtype).itemsize
    # Explicit VMEM budget for the chosen tile (double-buffered x/out, weights
    # charged at the default double-buffer allocation, f32/bf16 intermediates),
    # with headroom, capped at 64 MiB so the same tile also fits v7x VMEM.
    vmem_bytes = (
        2 * tm * in_dim * 4                                           # pipelined x tiles (f32)
        + 2 * tm * out_dim * 4                                        # pipelined out tiles (f32)
        + 2 * (in_dim * h1_p + h1_p * h2_p + h2_p * out_dim) * w_dt_sz  # resident weights
        + 2 * out_dim * 4                                             # bias
        + tm * (h1_p + h2_p + out_dim) * 4                            # f32 intermediates
        + tm * (in_dim + h1_p + h2_p) * w_dt_sz                       # bf16 operand copies
    )
    vmem_limit = min(max(int(vmem_bytes * 1.5), 16 * 1024 * 1024), 64 * 1024 * 1024)

    flops = 2 * b_pad * (in_dim * h1_p + h1_p * h2_p + h2_p * out_dim)
    bytes_accessed = (
        b_pad * in_dim * 4
        + (in_dim * h1_p + h1_p * h2_p + h2_p * out_dim) * w_dt_sz
        + out_dim * 4
        + b_pad * out_dim * 4
    )

    out = pl.pallas_call(
        _critic_mlp_kernel,
        out_shape=jax.ShapeDtypeStruct((b_pad, out_dim), jnp.float32),
        grid=grid,
        in_specs=[
            # x: streamed per batch tile, UNPADDED feature dim (== full array dim)
            pl.BlockSpec((tm, in_dim), lambda i: (i, 0)),
            # weights/bias: constant index_map -> fetched once, VMEM-resident
            pl.BlockSpec((in_dim, h1_p), lambda i: (0, 0)),
            pl.BlockSpec((h1_p, h2_p), lambda i: (0, 0)),
            pl.BlockSpec((h2_p, out_dim), lambda i: (0, 0)),
            pl.BlockSpec((1, out_dim), lambda i: (0, 0)),
        ],
        # UNPADDED output columns: ~32x fewer store bytes than a 128-lane slab.
        out_specs=pl.BlockSpec((tm, out_dim), lambda i: (i, 0)),
        compiler_params=pltpu.CompilerParams(
            dimension_semantics=("parallel",),   # megacore sharding on v7x when grid >= 2
            vmem_limit_bytes=vmem_limit,
        ),
        cost_estimate=pl.CostEstimate(
            flops=flops, transcendentals=0, bytes_accessed=bytes_accessed),
    )(x, w1_p, w2_p, w3_p, b3_p)

    return out[:B] if b_pad != B else out


# ----------------------------- XLA fallback & dispatch ----------------------

def critic_network_forward_xla(x, params):
    """Fused-XLA path for small batches (same bf16-operand / f32-accumulate recipe)."""
    w1_p, w2_p, w3_p, b3_p = params
    h = jnp.maximum(jnp.dot(x.astype(w1_p.dtype), w1_p,
                            preferred_element_type=jnp.float32), 0.0)
    h = jnp.maximum(jnp.dot(h.astype(w2_p.dtype), w2_p,
                            preferred_element_type=jnp.float32), 0.0)
    return jnp.dot(h.astype(w3_p.dtype), w3_p,
                   preferred_element_type=jnp.float32) + b3_p


def critic_network_forward(x, params, *, small_batch_threshold=2048, block_m=2048):
    """Dispatch: tiny batches -> fused XLA; large batches -> Pallas kernel."""
    if x.shape[0] <= small_batch_threshold:
        return critic_network_forward_xla(x, params)
    return critic_network_forward_pallas(x, params, block_m=block_m)


# ----------------------------- demo / self-test -----------------------------

if __name__ == "__main__":
    # CriticNetwork(input=32, hidden=[64, 32], output=4), dropout_rate=0.0
    batch = 8
    input_neurons = 32
    hidden_neurons = [64, 32]
    output_neurons = 4

    key = jax.random.PRNGKey(0)
    kx, k1, k2, k3, kb = jax.random.split(key, 5)

    def init_linear(k, fan_in, fan_out):
        # Deterministic kaiming-uniform-like init (matches nn.Linear scale).
        bound = 1.0 / jnp.sqrt(jnp.float32(fan_in))
        return jax.random.uniform(k, (fan_in, fan_out), jnp.float32, -bound, bound)

    x = jax.random.normal(kx, (batch, input_neurons), jnp.float32)
    w1 = init_linear(k1, input_neurons, hidden_neurons[0])       # [in, h1]
    w2 = init_linear(k2, hidden_neurons[0], hidden_neurons[1])   # [h1, h2]
    w3 = init_linear(k3, hidden_neurons[1], output_neurons)      # [h2, out]
    b_bound = 1.0 / jnp.sqrt(jnp.float32(hidden_neurons[1]))
    b3 = jax.random.uniform(kb, (1, output_neurons), jnp.float32, -b_bound, b_bound)

    # Constant weight prep done ONCE, outside the per-call path.
    params = prepare_critic_params(w1, w2, w3, b3)
    jax.block_until_ready(params)

    # Run the Pallas kernel (forced here to exercise it; the dispatcher would
    # pick the fused-XLA path for a batch this small).
    out = critic_network_forward_pallas(x, params)
    jax.block_until_ready(out)
    assert out.shape == (batch, output_neurons)

    # Mirror reference (same bf16-operand / f32-accumulate recipe) — tight check.
    xb, w1b, w2b, w3b = (a.astype(jnp.bfloat16) for a in (x, w1, w2, w3))
    h = jnp.maximum(jnp.dot(xb, w1b, preferred_element_type=jnp.float32), 0.0)
    h = jnp.maximum(jnp.dot(h.astype(jnp.bfloat16), w2b,
                            preferred_element_type=jnp.float32), 0.0)
    ref_bf16 = jnp.dot(h.astype(jnp.bfloat16), w3b,
                       preferred_element_type=jnp.float32) + b3
    assert jnp.allclose(out, ref_bf16, atol=1e-3, rtol=1e-3)

    # Full-f32 reference — semantic sanity with bf16-appropriate tolerance.
    ref_f32 = jnp.maximum(x @ w1, 0.0)
    ref_f32 = jnp.maximum(ref_f32 @ w2, 0.0)
    ref_f32 = ref_f32 @ w3 + b3
    assert jnp.allclose(out, ref_f32, atol=5e-2, rtol=5e-2)

    # Dispatcher path (small batch -> fused XLA) agrees too.
    out_dispatch = critic_network_forward(x, params)
    jax.block_until_ready(out_dispatch)
    assert jnp.allclose(out_dispatch, ref_bf16, atol=1e-3, rtol=1e-3)

    print("KERNEL_OK")
</pallas_src>

<mosaic_0001>
module attributes {stable_mosaic.version = 11 : i64} {
  func.func @_critic_mlp_kernel(%arg0: i32, %arg1: memref<16x32xf32, #tpu.memory_space<vmem>>, %arg2: memref<32x128xbf16, #tpu.memory_space<vmem>>, %arg3: memref<128x128xbf16, #tpu.memory_space<vmem>>, %arg4: memref<128x4xbf16, #tpu.memory_space<vmem>>, %arg5: memref<1x4xf32, #tpu.memory_space<vmem>>, %arg6: memref<16x4xf32, #tpu.memory_space<vmem>>) attributes {dimension_semantics = [#tpu.dimension_semantics<parallel>], iteration_bounds = array<i64: 1>, scalar_prefetch = 0 : i64, scratch_operands = 0 : i64, tpu.core_type = #tpu.core_type<tc>, window_params = [{transform_indices = @transform_0, window_bounds = array<i64: 16, 32>}, {pipeline_mode = #tpu.pipeline_mode<synchronous>, transform_indices = @transform_1, window_bounds = array<i64: 32, 128>}, {pipeline_mode = #tpu.pipeline_mode<synchronous>, transform_indices = @transform_2, window_bounds = array<i64: 128, 128>}, {pipeline_mode = #tpu.pipeline_mode<synchronous>, transform_indices = @transform_3, window_bounds = array<i64: 128, 4>}, {pipeline_mode = #tpu.pipeline_mode<synchronous>, transform_indices = @transform_4, window_bounds = array<i64: 1, 4>}, {transform_indices = @transform_5, window_bounds = array<i64: 16, 4>}]} {
    %c0 = arith.constant 0 : index
    %c0_0 = arith.constant 0 : index
    %0 = vector.load %arg1[%c0, %c0_0] : memref<16x32xf32, #tpu.memory_space<vmem>>, vector<16x32xf32>
    %1 = arith.truncf %0 : vector<16x32xf32> to vector<16x32xbf16>
    %c0_1 = arith.constant 0 : index
    %c0_2 = arith.constant 0 : index
    %2 = vector.load %arg2[%c0_1, %c0_2] : memref<32x128xbf16, #tpu.memory_space<vmem>>, vector<32x128xbf16>
    %cst = arith.constant dense<0.000000e+00> : vector<16x128xf32>
    %3 = tpu.matmul %1, %2, %cst {dimension_numbers = #tpu.dot_dimension_numbers<[1], [0], [0], [1], [0, 0, 1, 1], [], []>} : vector<16x32xbf16>, vector<32x128xbf16>, vector<16x128xf32> -> vector<16x128xf32>
    %cst_3 = arith.constant 0.000000e+00 : f32
    %4 = vector.broadcast %cst_3 : f32 to vector<16x128xf32>
    %5 = arith.maximumf %3, %4 : vector<16x128xf32>
    %6 = arith.truncf %5 : vector<16x128xf32> to vector<16x128xbf16>
    %c0_4 = arith.constant 0 : index
    %c0_5 = arith.constant 0 : index
    %7 = vector.load %arg3[%c0_4, %c0_5] : memref<128x128xbf16, #tpu.memory_space<vmem>>, vector<128x128xbf16>
    %cst_6 = arith.constant dense<0.000000e+00> : vector<16x128xf32>
    %8 = tpu.matmul %6, %7, %cst_6 {dimension_numbers = #tpu.dot_dimension_numbers<[1], [0], [0], [1], [0, 0, 1, 1], [], []>} : vector<16x128xbf16>, vector<128x128xbf16>, vector<16x128xf32> -> vector<16x128xf32>
    %cst_7 = arith.constant 0.000000e+00 : f32
    %9 = vector.broadcast %cst_7 : f32 to vector<16x128xf32>
    %10 = arith.maximumf %8, %9 : vector<16x128xf32>
    %11 = arith.truncf %10 : vector<16x128xf32> to vector<16x128xbf16>
    %c0_8 = arith.constant 0 : index
    %c0_9 = arith.constant 0 : index
    %12 = vector.load %arg4[%c0_8, %c0_9] : memref<128x4xbf16, #tpu.memory_space<vmem>>, vector<128x4xbf16>
    %cst_10 = arith.constant dense<0.000000e+00> : vector<16x4xf32>
    %13 = tpu.matmul %11, %12, %cst_10 {dimension_numbers = #tpu.dot_dimension_numbers<[1], [0], [0], [1], [0, 0, 1, 1], [], []>} : vector<16x128xbf16>, vector<128x4xbf16>, vector<16x4xf32> -> vector<16x4xf32>
    %c0_11 = arith.constant 0 : index
    %c0_12 = arith.constant 0 : index
    %14 = vector.load %arg5[%c0_11, %c0_12] : memref<1x4xf32, #tpu.memory_space<vmem>>, vector<1x4xf32>
    %15 = vector.broadcast %14 : vector<1x4xf32> to vector<16x4xf32>
    %16 = arith.addf %13, %15 : vector<16x4xf32>
    %c0_13 = arith.constant 0 : index
    %c0_14 = arith.constant 0 : index
    %17 = vector.load %arg6[%c0_13, %c0_14] : memref<16x4xf32, #tpu.memory_space<vmem>>, vector<16x4xf32>
    tpu.vector_store %arg6[%c0_13, %c0_14], %16 {strides = array<i32>} : memref<16x4xf32, #tpu.memory_space<vmem>>, vector<16x4xf32>,
    return
  }
  func.func @transform_0(%arg0: i32) -> (i32, i32) {
    %c0_i32 = arith.constant 0 : i32
    %c0_i32_0 = arith.constant 0 : i32
    return %arg0, %c0_i32 : i32, i32
  }
  func.func @transform_1(%arg0: i32) -> (i32, i32) {
    %c0_i32 = arith.constant 0 : i32
    %c0_i32_0 = arith.constant 0 : i32
    %c0_i32_1 = arith.constant 0 : i32
    return %c0_i32, %c0_i32_0 : i32, i32
  }
  func.func @transform_2(%arg0: i32) -> (i32, i32) {
    %c0_i32 = arith.constant 0 : i32
    %c0_i32_0 = arith.constant 0 : i32
    %c0_i32_1 = arith.constant 0 : i32
    return %c0_i32, %c0_i32_0 : i32, i32
  }
  func.func @transform_3(%arg0: i32) -> (i32, i32) {
    %c0_i32 = arith.constant 0 : i32
    %c0_i32_0 = arith.constant 0 : i32
    %c0_i32_1 = arith.constant 0 : i32
    return %c0_i32, %c0_i32_0 : i32, i32
  }
  func.func @transform_4(%arg0: i32) -> (i32, i32) {
    %c0_i32 = arith.constant 0 : i32
    %c0_i32_0 = arith.constant 0 : i32
    %c0_i32_1 = arith.constant 0 : i32
    return %c0_i32, %c0_i32_0 : i32, i32
  }
  func.func @transform_5(%arg0: i32) -> (i32, i32) {
    %c0_i32 = arith.constant 0 : i32
    %c0_i32_0 = arith.constant 0 : i32
    return %arg0, %c0_i32 : i32, i32
  }
}

</mosaic_0001>

<llo_original>
// kernel: tpu_custom_call.1
$region0: #{tpu_custom_call.1}
  #allocation0 [shape = 'u32[]', space=smem, size = 0x4, offset = 0x4, fixed_abs, tag = 'smem constant byte address 0x4 - core index']
  #allocation1 [shape = 'u32[144,128]{1,0:T(1,128)}', space=vmem, size = 0x12000, scoped, tag = 'internal scratch']
  %s0 = inlined_call_operand.hbm [shape: f32[16,32], index: 0, kind: input, shape index: {}]
  %s1 = inlined_call_operand.hbm [shape: bf16[32,128], index: 1, kind: input, shape index: {}]
  %s2 = inlined_call_operand.vmem [shape: bf16[128,128], index: 2, kind: input, shape index: {}]
  %s3 = inlined_call_operand.vmem [shape: bf16[128,4], index: 3, kind: input, shape index: {}]
  %s4 = inlined_call_operand.vmem [shape: f32[1,4], index: 4, kind: input, shape index: {}]
  %s5 = inlined_call_operand.vmem [shape: f32[16,4], index: 5, kind: output, shape index: {}]
  %s6 = sld [smem:[#allocation0]]
  $region38: #{tpu_custom_call.1} parent=0
    _
  %s8 = ssub.s32 1, %s6
  %s9 = scalar_select 0, %s8, %s6
  $region1: #{tpu_custom_call.1} parent=0
    #allocation2 [shape = 'u8[8192]{0}', space=vmem, size = 0x2000, scoped, tag = 'input window, operand 0, single buffered']
    #allocation3 [shape = 's32[1]{0}', space=sflag, size = 0x4, scoped, tag = 'scoped memory for tpu_custom_call.1']
    #allocation4 [shape = 'u8[8192]{0}', space=vmem, size = 0x2000, scoped, tag = 'input window, operand 1, single buffered']
    #allocation5 [shape = 's32[1]{0}', space=sflag, size = 0x4, scoped, tag = 'scoped memory for tpu_custom_call.1']
    %10 = vsyncpa [#allocation3], 0
    %11 = vsyncpa [#allocation5], 0
    // Predicated region
    $region2: #{tpu_custom_call.1} parent=1 // pred_check
      _
    $region3: #{tpu_custom_call.1} parent=1 // pred_check_branch
      %13 = sbr.rel (0) target = $region5
    $region4: #{tpu_custom_call.1} parent=1 // pred_region
      %s15 = ssub.s32 256, 256
      %16 = vsyncadd [#allocation3], %s15
      %s17 = sshll.u32 [#allocation2], 4
      %s18 = int_to_ptr.vmem [resolvable:$true] %s17
      %23 = dma.hbm_to_vmem [thread:$0]  %s0, 256, %s18, [#allocation3], 128, 128, 8
    $region5: #{tpu_custom_call.1} parent=1 // pred_fallthru
      _
    // Predicated region
    $region6: #{tpu_custom_call.1} parent=1 // pred_check
      _
    $region7: #{tpu_custom_call.1} parent=1 // pred_check_branch
      %25 = sbr.rel (0) target = $region9
    $region8: #{tpu_custom_call.1} parent=1 // pred_region
      %s27 = ssub.s32 256, 256
      %28 = vsyncadd [#allocation5], %s27
      %s29 = sshll.u32 [#allocation4], 4
      %s30 = int_to_ptr.vmem [resolvable:$true] %s29
      %35 = dma.hbm_to_vmem [thread:$0]  %s1, 256, %s30, [#allocation5], 64, 64, 4
    $region9: #{tpu_custom_call.1} parent=1 // pred_fallthru
      _
    // Predicated region
    $region10: #{tpu_custom_call.1} parent=1 // pred_check
      _
    $region11: #{tpu_custom_call.1} parent=1 // pred_check_branch
      %37 = sbr.rel (0) target = $region13
    $region12: #{tpu_custom_call.1} parent=1 // pred_region
      _
    $region13: #{tpu_custom_call.1} parent=1 // pred_fallthru
      _
    // Predicated region
    $region14: #{tpu_custom_call.1} parent=1 // pred_check
      _
    $region15: #{tpu_custom_call.1} parent=1 // pred_check_branch
      %39 = sbr.rel (0) target = $region17
    $region16: #{tpu_custom_call.1} parent=1 // pred_region
      _
    $region17: #{tpu_custom_call.1} parent=1 // pred_fallthru
      _
    // Predicated region
    $region18: #{tpu_custom_call.1} parent=1 // pred_check
      _
    $region19: #{tpu_custom_call.1} parent=1 // pred_check_branch
      %41 = sbr.rel (0) target = $region21
    $region20: #{tpu_custom_call.1} parent=1 // pred_region
      _
    $region21: #{tpu_custom_call.1} parent=1 // pred_fallthru
      _
    // Predicated region
    $region22: #{tpu_custom_call.1} parent=1 // pred_check
      _
    $region23: #{tpu_custom_call.1} parent=1 // pred_check_branch
      %43 = sbr.rel (0) target = $region25
    $region24: #{tpu_custom_call.1} parent=1 // pred_region
      %44 = dma.done [#allocation3], 256
    $region25: #{tpu_custom_call.1} parent=1 // pred_fallthru
      _
    // Predicated region
    $region26: #{tpu_custom_call.1} parent=1 // pred_check
      _
    $region27: #{tpu_custom_call.1} parent=1 // pred_check_branch
      %46 = sbr.rel (0) target = $region29
    $region28: #{tpu_custom_call.1} parent=1 // pred_region
      %47 = dma.done [#allocation5], 256
    $region29: #{tpu_custom_call.1} parent=1 // pred_fallthru
      _
    %v49 = vld [vmem:[#allocation2] sm:$0xff]
    %v50 = vld [vmem:[#allocation2 + $0x8] sm:$0xff]
    %v51 = vpack.c.bf16 %v50, %v49
    %v52 = vld [vmem:[#allocation4] sm:$0xf]
    %v53 = vld [vmem:[#allocation4 + $0x4] sm:$0xf]
    %v54 = vld [vmem:[#allocation4 + $0x8] sm:$0xf]
    %v55 = vld [vmem:[#allocation4 + $0xc] sm:$0xf]
    %v60 = vunpack.c.l.b16 %v52
    %v61 = vunpack.c.l.b16 %v53
    %v62 = vunpack.c.l.b16 %v54
    %v63 = vunpack.c.l.b16 %v55
    %v64 = vpack.c.b16 %v61, %v60
    %v65 = vpack.c.b16 %v63, %v62
    %vm68 = vcmask 261120
    %v70 = vsel %vm68, %v51, 0
    %72 = vmatprep.subr.bf16.mxu0 0
    %73 = vmatpush1.bf16.msra.mxu0 %v64
    %74 = vmatprep.subr.bf16.mxu0 0
    %75 = vmatpush1.bf16.msra.mxu0 %v65
    %76 = vmatprep.subr.bf16.mxu0 0
    %77 = vmatpush1.bf16.msra.mxu0 0
    %78 = vmatprep.subr.bf16.mxu0 0
    %79 = vmatpush1.bf16.msra.mxu0 0
    %80 = vmatprep.subr.bf16.mxu0 0
    %81 = vmatpush1.bf16.msra.mxu0 0
    %82 = vmatprep.subr.bf16.mxu0 0
    %83 = vmatpush1.bf16.msra.mxu0 0
    %84 = vmatprep.subr.bf16.mxu0 0
    %85 = vmatpush1.bf16.msra.mxu0 0
    %86 = vmatprep.subr.bf16.mxu0 0
    %87 = vmatpush1.bf16.msra.mxu0 0
    %88 = vmatprep.subr.bf16.mxu0 0
    %89 = vmatpush1.bf16.msra.mxu0 0
    %90 = vmatprep.subr.bf16.mxu0 0
    %91 = vmatpush1.bf16.msra.mxu0 0
    %92 = vmatprep.subr.bf16.mxu0 0
    %93 = vmatpush1.bf16.msra.mxu0 0
    %94 = vmatprep.subr.bf16.mxu0 0
    %95 = vmatpush1.bf16.msra.mxu0 0
    %96 = vmatprep.subr.bf16.mxu0 0
    %97 = vmatpush1.bf16.msra.mxu0 0
    %98 = vmatprep.subr.bf16.mxu0 0
    %99 = vmatpush1.bf16.msra.mxu0 0
    %100 = vmatprep.subr.bf16.mxu0 0
    %101 = vmatpush1.bf16.msra.mxu0 0
    %102 = vmatprep.subr.bf16.mxu0 0
    %103 = vmatpush1.bf16.msra.mxu0 0
    %104 = vmatprep.mubr.bf16.mxu0 0
    %105 = vmatmul.mubr.bf16.gmra.mrb[0].mxu0 %v70
    %v106 = vpop.f32.mrb[0].mxu0
    %v107 = vadd.f32 0.0, %v106
    %v108 = vpop.f32.mrb[0].mxu0
    %v109 = vpop.f32.mrb[0].mxu0
    %v110 = vadd.f32 0.0, %v109
    %v111 = vpop.f32.mrb[0].mxu0
    %112 = vdwg.mxu0
    %v113 = vmax.f32 %v107, 0.0
    %v114 = vmax.f32 %v110, 0.0
    %v115 = vpack.c.bf16 %v114, %v113
    %v116 = vld [vmem:[%s2] sm:$0xf]
    %v117 = vld [vmem:[%s2 + $0x4] sm:$0xf]
    %v118 = vld [vmem:[%s2 + $0x8] sm:$0xf]
    %v119 = vld [vmem:[%s2 + $0xc] sm:$0xf]
    %v120 = vld [vmem:[%s2 + $0x10] sm:$0xf]
    %v121 = vld [vmem:[%s2 + $0x14] sm:$0xf]
    %v122 = vld [vmem:[%s2 + $0x18] sm:$0xf]
    %v123 = vld [vmem:[%s2 + $0x1c] sm:$0xf]
    %v124 = vld [vmem:[%s2 + $0x20] sm:$0xf]
    %v125 = vld [vmem:[%s2 + $0x24] sm:$0xf]
    %v126 = vld [vmem:[%s2 + $0x28] sm:$0xf]
    %v127 = vld [vmem:[%s2 + $0x2c] sm:$0xf]
    %v128 = vld [vmem:[%s2 + $0x30] sm:$0xf]
    %v129 = vld [vmem:[%s2 + $0x34] sm:$0xf]
    %v130 = vld [vmem:[%s2 + $0x38] sm:$0xf]
    %v131 = vld [vmem:[%s2 + $0x3c] sm:$0xf]
    %v148 = vunpack.c.l.b16 %v116
    %v149 = vunpack.c.l.b16 %v117
    %v150 = vunpack.c.l.b16 %v118
    %v151 = vunpack.c.l.b16 %v119
    %v152 = vunpack.c.l.b16 %v120
    %v153 = vunpack.c.l.b16 %v121
    %v154 = vunpack.c.l.b16 %v122
    %v155 = vunpack.c.l.b16 %v123
    %v156 = vunpack.c.l.b16 %v124
    %v157 = vunpack.c.l.b16 %v125
    %v158 = vunpack.c.l.b16 %v126
    %v159 = vunpack.c.l.b16 %v127
    %v160 = vunpack.c.l.b16 %v128
    %v161 = vunpack.c.l.b16 %v129
    %v162 = vunpack.c.l.b16 %v130
    %v163 = vunpack.c.l.b16 %v131
    %v164 = vpack.c.b16 %v149, %v148
    %v165 = vpack.c.b16 %v151, %v150
    %v166 = vpack.c.b16 %v153, %v152
    %v167 = vpack.c.b16 %v155, %v154
    %v168 = vpack.c.b16 %v157, %v156
    %v169 = vpack.c.b16 %v159, %v158
    %v170 = vpack.c.b16 %v161, %v160
    %v171 = vpack.c.b16 %v163, %v162
    %180 = vmatprep.subr.bf16.mxu0 0
    %181 = vmatpush1.bf16.msra.mxu0 %v164
    %182 = vmatprep.subr.bf16.mxu0 0
    %183 = vmatpush1.bf16.msra.mxu0 %v165
    %184 = vmatprep.subr.bf16.mxu0 0
    %185 = vmatpush1.bf16.msra.mxu0 %v166
    %186 = vmatprep.subr.bf16.mxu0 0
    %187 = vmatpush1.bf16.msra.mxu0 %v167
    %188 = vmatprep.subr.bf16.mxu0 0
    %189 = vmatpush1.bf16.msra.mxu0 %v168
    %190 = vmatprep.subr.bf16.mxu0 0
    %191 = vmatpush1.bf16.msra.mxu0 %v169
    %192 = vmatprep.subr.bf16.mxu0 0
    %193 = vmatpush1.bf16.msra.mxu0 %v170
    %194 = vmatprep.subr.bf16.mxu0 0
    %195 = vmatpush1.bf16.msra.mxu0 %v171
    %196 = vmatprep.subr.bf16.mxu0 0
    %197 = vmatpush1.bf16.msra.mxu0 0
    %198 = vmatprep.subr.bf16.mxu0 0
    %199 = vmatpush1.bf16.msra.mxu0 0
    %200 = vmatprep.subr.bf16.mxu0 0
    %201 = vmatpush1.bf16.msra.mxu0 0
    %202 = vmatprep.subr.bf16.mxu0 0
    %203 = vmatpush1.bf16.msra.mxu0 0
    %204 = vmatprep.subr.bf16.mxu0 0
    %205 = vmatpush1.bf16.msra.mxu0 0
    %206 = vmatprep.subr.bf16.mxu0 0
    %207 = vmatpush1.bf16.msra.mxu0 0
    %208 = vmatprep.subr.bf16.mxu0 0
    %209 = vmatpush1.bf16.msra.mxu0 0
    %210 = vmatprep.subr.bf16.mxu0 0
    %211 = vmatpush1.bf16.msra.mxu0 0
    %212 = vmatprep.mubr.bf16.mxu0 0
    %213 = vmatmul.mubr.bf16.gmra.mrb[0].mxu0 %v115
    %v214 = vpop.f32.mrb[0].mxu0
    %v215 = vadd.f32 0.0, %v214
    %v216 = vpop.f32.mrb[0].mxu0
    %v217 = vpop.f32.mrb[0].mxu0
    %v218 = vadd.f32 0.0, %v217
    %v219 = vpop.f32.mrb[0].mxu0
    %220 = vdwg.mxu0
    %v221 = vmax.f32 %v215, 0.0
    %v222 = vmax.f32 %v218, 0.0
    %v223 = vpack.c.bf16 %v222, %v221
    %v224 = vld [vmem:[%s3] sm:$0xf]
    %v225 = vld [vmem:[%s3 + $0x4] sm:$0xf]
    %v226 = vld [vmem:[%s3 + $0x8] sm:$0xf]
    %v227 = vld [vmem:[%s3 + $0xc] sm:$0xf]
    %v228 = vld [vmem:[%s3 + $0x10] sm:$0xf]
    %v229 = vld [vmem:[%s3 + $0x14] sm:$0xf]
    %v230 = vld [vmem:[%s3 + $0x18] sm:$0xf]
    %v231 = vld [vmem:[%s3 + $0x1c] sm:$0xf]
    %v232 = vld [vmem:[%s3 + $0x20] sm:$0xf]
    %v233 = vld [vmem:[%s3 + $0x24] sm:$0xf]
    %v234 = vld [vmem:[%s3 + $0x28] sm:$0xf]
    %v235 = vld [vmem:[%s3 + $0x2c] sm:$0xf]
    %v236 = vld [vmem:[%s3 + $0x30] sm:$0xf]
    %v237 = vld [vmem:[%s3 + $0x34] sm:$0xf]
    %v238 = vld [vmem:[%s3 + $0x38] sm:$0xf]
    %v239 = vld [vmem:[%s3 + $0x3c] sm:$0xf]
    %v240 = vld [vmem:[%s4] sm:$0x1]
    %v242 = vlaneseq
    %v243 = vshrl.u32 %v242, 7
    %v244 = vsub.s32 0, %v243
    %v245 = vrot.slane %v240, %v244
    %v263 = vunpack.c.l.b16 %v224
    %v264 = vunpack.c.l.b16 %v225
    %v265 = vunpack.c.l.b16 %v226
    %v266 = vunpack.c.l.b16 %v227
    %v267 = vunpack.c.l.b16 %v228
    %v268 = vunpack.c.l.b16 %v229
    %v269 = vunpack.c.l.b16 %v230
    %v270 = vunpack.c.l.b16 %v231
    %v271 = vunpack.c.l.b16 %v232
    %v272 = vunpack.c.l.b16 %v233
    %v273 = vunpack.c.l.b16 %v234
    %v274 = vunpack.c.l.b16 %v235
    %v275 = vunpack.c.l.b16 %v236
    %v276 = vunpack.c.l.b16 %v237
    %v277 = vunpack.c.l.b16 %v238
    %v278 = vunpack.c.l.b16 %v239
    %v279 = vpack.c.b16 %v264, %v263
    %v280 = vpack.c.b16 %v266, %v265
    %v281 = vpack.c.b16 %v268, %v267
    %v282 = vpack.c.b16 %v270, %v269
    %v283 = vpack.c.b16 %v272, %v271
    %v284 = vpack.c.b16 %v274, %v273
    %v285 = vpack.c.b16 %v276, %v275
    %v286 = vpack.c.b16 %v278, %v277
    %295 = vmatprep.subr.bf16.mxu0 0
    %296 = vmatpush1.bf16.msra.mxu0 %v279
    %297 = vmatprep.subr.bf16.mxu0 0
    %298 = vmatpush1.bf16.msra.mxu0 %v280
    %299 = vmatprep.subr.bf16.mxu0 0
    %300 = vmatpush1.bf16.msra.mxu0 %v281
    %301 = vmatprep.subr.bf16.mxu0 0
    %302 = vmatpush1.bf16.msra.mxu0 %v282
    %303 = vmatprep.subr.bf16.mxu0 0
    %304 = vmatpush1.bf16.msra.mxu0 %v283
    %305 = vmatprep.subr.bf16.mxu0 0
    %306 = vmatpush1.bf16.msra.mxu0 %v284
    %307 = vmatprep.subr.bf16.mxu0 0
    %308 = vmatpush1.bf16.msra.mxu0 %v285
    %309 = vmatprep.subr.bf16.mxu0 0
    %310 = vmatpush1.bf16.msra.mxu0 %v286
    %311 = vmatprep.subr.bf16.mxu0 0
    %312 = vmatpush1.bf16.msra.mxu0 0
    %313 = vmatprep.subr.bf16.mxu0 0
    %314 = vmatpush1.bf16.msra.mxu0 0
    %315 = vmatprep.subr.bf16.mxu0 0
    %316 = vmatpush1.bf16.msra.mxu0 0
    %317 = vmatprep.subr.bf16.mxu0 0
    %318 = vmatpush1.bf16.msra.mxu0 0
    %319 = vmatprep.subr.bf16.mxu0 0
    %320 = vmatpush1.bf16.msra.mxu0 0
    %321 = vmatprep.subr.bf16.mxu0 0
    %322 = vmatpush1.bf16.msra.mxu0 0
    %323 = vmatprep.subr.bf16.mxu0 0
    %324 = vmatpush1.bf16.msra.mxu0 0
    %325 = vmatprep.subr.bf16.mxu0 0
    %326 = vmatpush1.bf16.msra.mxu0 0
    %327 = vmatprep.mubr.bf16.mxu0 0
    %328 = vmatmul.mubr.bf16.gmra.mrb[0].mxu0 %v223
    %v329 = vpop.f32.mrb[0].mxu0
    %v330 = vadd.f32 %v245, %v329
    %v331 = vpop.f32.mrb[0].mxu0
    %v332 = vpop.f32.mrb[0].mxu0
    %v333 = vadd.f32 %v245, %v332
    %v334 = vpop.f32.mrb[0].mxu0
    %335 = vdwg.mxu0
    %vm336 = vcmask 31744
    %337 = vst.msk [vmem:[%s5] sm:$0xff] %vm336, %v330
    %338 = vst.msk [vmem:[%s5 + $0x8] sm:$0xff] %vm336, %v333
    // Predicated region
    $region30: #{tpu_custom_call.1} parent=1 // pred_check
      _
    $region31: #{tpu_custom_call.1} parent=1 // pred_check_branch
      %340 = sbr.rel (0) target = $region33
    $region32: #{tpu_custom_call.1} parent=1 // pred_region
      _
    $region33: #{tpu_custom_call.1} parent=1 // pred_fallthru
      _
    // Predicated region
    $region34: #{tpu_custom_call.1} parent=1 // pred_check
      _
    $region35: #{tpu_custom_call.1} parent=1 // pred_check_branch
      %342 = sbr.rel (0) target = $region37
    $region36: #{tpu_custom_call.1} parent=1 // pred_region
      _
    $region37: #{tpu_custom_call.1} parent=1 // pred_fallthru
      _
    %343 = vsyncpa [#allocation3], 1
    %344 = vsyncpa [#allocation5], 1

</llo_original>
